<compile_context>
chip_gen: v6e
topology: v6e:2x2x1
jax: 0.10.0
libtpu: 0.0.40
codegen_flags: <defaults>
</compile_context>

<pallas_src>
import functools

import jax
import jax.numpy as jnp
from jax.experimental import pallas as pl
from jax.experimental.pallas import tpu as pltpu

N_EMBD = 128
HIDDEN = 4 * N_EMBD
DROPOUT_P = 0.2


def _round_up(x, m):
    return ((x + m - 1) // m) * m


def _ffn_kernel(*refs, training: bool):
    if training:
        x_ref, w1_ref, b1_ref, w2_ref, b2_ref, u_ref, o_ref, h_ref = refs
    else:
        x_ref, w1_ref, b1_ref, w2_ref, b2_ref, o_ref, h_ref = refs
        u_ref = None

    # hidden = relu(x @ W1 + b1): bf16 operands on the MXU, f32 accumulation,
    # bias + ReLU in f32 on the VPU.
    h = jnp.dot(x_ref[...].astype(jnp.bfloat16), w1_ref[...],
                preferred_element_type=jnp.float32)
    h = jnp.maximum(h + b1_ref[...], 0.0)

    # Stage the (tile_m, HIDDEN) activation through VMEM scratch in bf16 so the
    # second matmul reads it back without blowing up vreg pressure.
    h_ref[...] = h.astype(jnp.bfloat16)

    # y = h @ W2 + b2
    y = jnp.dot(h_ref[...], w2_ref[...], preferred_element_type=jnp.float32)
    y = y + b2_ref[...]

    if training:
        # Inverted dropout, p = DROPOUT_P: keep with prob (1-p), scale by 1/(1-p).
        inv_keep = 1.0 / (1.0 - DROPOUT_P)
        y = jnp.where(u_ref[...] >= DROPOUT_P, y * inv_keep, 0.0)

    o_ref[...] = y.astype(o_ref.dtype)


def feed_forward(x, w1, b1, w2, b2, *, training=False, key=None, tile_m=256):
    """x: (B, T, C) float32. Returns (B, T, C)."""
    B, T, C = x.shape
    assert C == N_EMBD
    M = B * T

    # Clamp tile to the (padded) problem size; keep it a multiple of 8 (f32).
    tile_m = min(tile_m, _round_up(M, 8))
    M_pad = _round_up(M, tile_m)

    x2d = x.reshape(M, C)
    if M_pad != M:
        x2d = jnp.pad(x2d, ((0, M_pad - M), (0, 0)))

    # bf16 weight operands for the MXU; biases stay f32 for the epilogue.
    w1_bf = w1.astype(jnp.bfloat16)
    w2_bf = w2.astype(jnp.bfloat16)
    b1_2d = b1.reshape(1, HIDDEN).astype(jnp.float32)
    b2_2d = b2.reshape(1, C).astype(jnp.float32)

    inputs = [x2d, w1_bf, b1_2d, w2_bf, b2_2d]
    in_specs = [
        pl.BlockSpec((tile_m, C), lambda i: (i, 0)),     # x tile
        pl.BlockSpec((C, HIDDEN), lambda i: (0, 0)),     # W1 (resident)
        pl.BlockSpec((1, HIDDEN), lambda i: (0, 0)),     # b1
        pl.BlockSpec((HIDDEN, C), lambda i: (0, 0)),     # W2 (resident)
        pl.BlockSpec((1, C), lambda i: (0, 0)),          # b2
    ]

    if training:
        if key is None:
            key = jax.random.PRNGKey(0)
        # Tiling-invariant dropout mask: drawn once for the true M rows, padded
        # rows filled with 1.0 (always kept, then sliced off).
        # TODO(synk): on-chip PRNG (pltpu.prng_seed / prng_random_bits) would
        # avoid this extra HBM stream, but it does not lower in interpret/CPU
        # mode, so the mask is precomputed host-side.
        u = jax.random.uniform(key, (M, C), dtype=jnp.float32)
        if M_pad != M:
            u = jnp.pad(u, ((0, M_pad - M), (0, 0)), constant_values=1.0)
        inputs.append(u)
        in_specs.append(pl.BlockSpec((tile_m, C), lambda i: (i, 0)))

    kernel = functools.partial(_ffn_kernel, training=training)

    out = pl.pallas_call(
        kernel,
        out_shape=jax.ShapeDtypeStruct((M_pad, C), x.dtype),
        grid=(M_pad // tile_m,),
        in_specs=in_specs,
        out_specs=pl.BlockSpec((tile_m, C), lambda i: (i, 0)),
        scratch_shapes=[pltpu.VMEM((tile_m, HIDDEN), jnp.bfloat16)],
        compiler_params=pltpu.CompilerParams(
            dimension_semantics=("parallel",)),
    )(*inputs)

    if M_pad != M:
        out = out[:M]
    return out.reshape(B, T, C)


def init_params(key):
    """Deterministic init matching PyTorch Linear default (kaiming-uniform-ish)."""
    k1, k2, k3, k4 = jax.random.split(key, 4)
    bound1 = 1.0 / jnp.sqrt(N_EMBD)
    bound2 = 1.0 / jnp.sqrt(HIDDEN)
    # stored as (in, out) so the kernel does x @ W directly
    w1 = jax.random.uniform(k1, (N_EMBD, HIDDEN), jnp.float32, -bound1, bound1)
    b1 = jax.random.uniform(k2, (HIDDEN,), jnp.float32, -bound1, bound1)
    w2 = jax.random.uniform(k3, (HIDDEN, N_EMBD), jnp.float32, -bound2, bound2)
    b2 = jax.random.uniform(k4, (N_EMBD,), jnp.float32, -bound2, bound2)
    return w1, b1, w2, b2


if __name__ == "__main__":
    key = jax.random.PRNGKey(0)
    kx, kp, kd = jax.random.split(key, 3)

    B, T = 2, 8
    x = jax.random.normal(kx, (B, T, N_EMBD), dtype=jnp.float32)
    w1, b1, w2, b2 = init_params(kp)

    # ---- Eval-mode forward (Dropout is identity): check vs pure-JAX reference
    # computed with the same bf16-matmul / f32-accumulation numerics.
    y = feed_forward(x, w1, b1, w2, b2, training=False)
    y = jax.block_until_ready(y)

    x2d = x.reshape(-1, N_EMBD)
    h_ref = jnp.maximum(
        jnp.dot(x2d.astype(jnp.bfloat16), w1.astype(jnp.bfloat16),
                preferred_element_type=jnp.float32) + b1, 0.0)
    ref = jnp.dot(h_ref.astype(jnp.bfloat16), w2.astype(jnp.bfloat16),
                  preferred_element_type=jnp.float32) + b2
    ref = ref.reshape(B, T, N_EMBD)
    assert jnp.allclose(y, ref, atol=2e-2, rtol=2e-2), "mismatch vs reference"

    # ---- Training-mode forward: dropout (p=0.2) with inverted scaling.
    y_train = feed_forward(x, w1, b1, w2, b2, training=True, key=kd)
    y_train = jax.block_until_ready(y_train)

    dropped = float(jnp.mean((y_train == 0.0).astype(jnp.float32)))
    assert 0.05 < dropped < 0.40, f"unexpected dropout rate {dropped}"
    kept_err = jnp.where(y_train != 0.0,
                         y_train - ref / (1.0 - DROPOUT_P), 0.0)
    assert float(jnp.max(jnp.abs(kept_err))) < 5e-2, "kept values mismatch"

    print("KERNEL_OK")
</pallas_src>

<mosaic_0001>
module attributes {stable_mosaic.version = 11 : i64} {
  func.func @_ffn_kernel(%arg0: i32, %arg1: memref<16x128xf32, #tpu.memory_space<vmem>>, %arg2: memref<128x512xbf16, #tpu.memory_space<vmem>>, %arg3: memref<1x512xf32, #tpu.memory_space<vmem>>, %arg4: memref<512x128xbf16, #tpu.memory_space<vmem>>, %arg5: memref<1x128xf32, #tpu.memory_space<vmem>>, %arg6: memref<16x128xf32, #tpu.memory_space<vmem>>, %arg7: memref<16x512xbf16, #tpu.memory_space<vmem>>) attributes {dimension_semantics = [#tpu.dimension_semantics<parallel>], iteration_bounds = array<i64: 1>, scalar_prefetch = 0 : i64, scratch_operands = 1 : i64, tpu.core_type = #tpu.core_type<tc>, window_params = [{transform_indices = @transform_0, window_bounds = array<i64: 16, 128>}, {pipeline_mode = #tpu.pipeline_mode<synchronous>, transform_indices = @transform_1, window_bounds = array<i64: 128, 512>}, {pipeline_mode = #tpu.pipeline_mode<synchronous>, transform_indices = @transform_2, window_bounds = array<i64: 1, 512>}, {pipeline_mode = #tpu.pipeline_mode<synchronous>, transform_indices = @transform_3, window_bounds = array<i64: 512, 128>}, {pipeline_mode = #tpu.pipeline_mode<synchronous>, transform_indices = @transform_4, window_bounds = array<i64: 1, 128>}, {transform_indices = @transform_5, window_bounds = array<i64: 16, 128>}]} {
    %c0 = arith.constant 0 : index
    %c0_0 = arith.constant 0 : index
    %0 = vector.load %arg1[%c0, %c0_0] : memref<16x128xf32, #tpu.memory_space<vmem>>, vector<16x128xf32>
    %1 = arith.truncf %0 : vector<16x128xf32> to vector<16x128xbf16>
    %c0_1 = arith.constant 0 : index
    %c0_2 = arith.constant 0 : index
    %2 = vector.load %arg2[%c0_1, %c0_2] : memref<128x512xbf16, #tpu.memory_space<vmem>>, vector<128x512xbf16>
    %cst = arith.constant dense<0.000000e+00> : vector<16x512xf32>
    %3 = tpu.matmul %1, %2, %cst {dimension_numbers = #tpu.dot_dimension_numbers<[1], [0], [0], [1], [0, 0, 1, 1], [], []>} : vector<16x128xbf16>, vector<128x512xbf16>, vector<16x512xf32> -> vector<16x512xf32>
    %c0_3 = arith.constant 0 : index
    %c0_4 = arith.constant 0 : index
    %4 = vector.load %arg3[%c0_3, %c0_4] : memref<1x512xf32, #tpu.memory_space<vmem>>, vector<1x512xf32>
    %5 = vector.broadcast %4 : vector<1x512xf32> to vector<16x512xf32>
    %6 = arith.addf %3, %5 : vector<16x512xf32>
    %cst_5 = arith.constant 0.000000e+00 : f32
    %7 = vector.broadcast %cst_5 : f32 to vector<16x512xf32>
    %8 = arith.maximumf %6, %7 : vector<16x512xf32>
    %9 = arith.truncf %8 : vector<16x512xf32> to vector<16x512xbf16>
    %c0_6 = arith.constant 0 : index
    %c0_7 = arith.constant 0 : index
    %10 = vector.load %arg7[%c0_6, %c0_7] : memref<16x512xbf16, #tpu.memory_space<vmem>>, vector<16x512xbf16>
    tpu.vector_store %arg7[%c0_6, %c0_7], %9 {strides = array<i32>} : memref<16x512xbf16, #tpu.memory_space<vmem>>, vector<16x512xbf16>,
    %c0_8 = arith.constant 0 : index
    %c0_9 = arith.constant 0 : index
    %11 = vector.load %arg7[%c0_8, %c0_9] : memref<16x512xbf16, #tpu.memory_space<vmem>>, vector<16x512xbf16>
    %c0_10 = arith.constant 0 : index
    %c0_11 = arith.constant 0 : index
    %12 = vector.load %arg4[%c0_10, %c0_11] : memref<512x128xbf16, #tpu.memory_space<vmem>>, vector<512x128xbf16>
    %cst_12 = arith.constant dense<0.000000e+00> : vector<16x128xf32>
    %13 = tpu.matmul %11, %12, %cst_12 {dimension_numbers = #tpu.dot_dimension_numbers<[1], [0], [0], [1], [0, 0, 1, 1], [], []>} : vector<16x512xbf16>, vector<512x128xbf16>, vector<16x128xf32> -> vector<16x128xf32>
    %c0_13 = arith.constant 0 : index
    %c0_14 = arith.constant 0 : index
    %14 = vector.load %arg5[%c0_13, %c0_14] : memref<1x128xf32, #tpu.memory_space<vmem>>, vector<1x128xf32>
    %15 = vector.broadcast %14 : vector<1x128xf32> to vector<16x128xf32>
    %16 = arith.addf %13, %15 : vector<16x128xf32>
    %c0_15 = arith.constant 0 : index
    %c0_16 = arith.constant 0 : index
    %17 = vector.load %arg6[%c0_15, %c0_16] : memref<16x128xf32, #tpu.memory_space<vmem>>, vector<16x128xf32>
    tpu.vector_store %arg6[%c0_15, %c0_16], %16 {strides = array<i32>} : memref<16x128xf32, #tpu.memory_space<vmem>>, vector<16x128xf32>,
    return
  }
  func.func @transform_0(%arg0: i32) -> (i32, i32) {
    %c0_i32 = arith.constant 0 : i32
    %c0_i32_0 = arith.constant 0 : i32
    return %arg0, %c0_i32 : i32, i32
  }
  func.func @transform_1(%arg0: i32) -> (i32, i32) {
    %c0_i32 = arith.constant 0 : i32
    %c0_i32_0 = arith.constant 0 : i32
    %c0_i32_1 = arith.constant 0 : i32
    return %c0_i32, %c0_i32_0 : i32, i32
  }
  func.func @transform_2(%arg0: i32) -> (i32, i32) {
    %c0_i32 = arith.constant 0 : i32
    %c0_i32_0 = arith.constant 0 : i32
    %c0_i32_1 = arith.constant 0 : i32
    return %c0_i32, %c0_i32_0 : i32, i32
  }
  func.func @transform_3(%arg0: i32) -> (i32, i32) {
    %c0_i32 = arith.constant 0 : i32
    %c0_i32_0 = arith.constant 0 : i32
    %c0_i32_1 = arith.constant 0 : i32
    return %c0_i32, %c0_i32_0 : i32, i32
  }
  func.func @transform_4(%arg0: i32) -> (i32, i32) {
    %c0_i32 = arith.constant 0 : i32
    %c0_i32_0 = arith.constant 0 : i32
    %c0_i32_1 = arith.constant 0 : i32
    return %c0_i32, %c0_i32_0 : i32, i32
  }
  func.func @transform_5(%arg0: i32) -> (i32, i32) {
    %c0_i32 = arith.constant 0 : i32
    %c0_i32_0 = arith.constant 0 : i32
    return %arg0, %c0_i32 : i32, i32
  }
}

</mosaic_0001>

<llo_original>
// kernel: tpu_custom_call.1
$region0: #{tpu_custom_call.1}
  #allocation0 [shape = 'u32[]', space=smem, size = 0x4, offset = 0x4, fixed_abs, tag = 'smem constant byte address 0x4 - core index']
  #allocation1 [shape = 'u32[144,128]{1,0:T(1,128)}', space=vmem, size = 0x12000, scoped, tag = 'internal scratch']
  #allocation2 [shape = 'bf16[16,512]{1,0:T(8,128)(2,1)}', space=vmem, size = 0x4000, scoped, tag = 'scratch operand']
  %s0 = inlined_call_operand.hbm [shape: f32[16,128], index: 0, kind: input, shape index: {}]
  %s1 = inlined_call_operand.hbm [shape: bf16[128,512], index: 1, kind: input, shape index: {}]
  %s2 = inlined_call_operand.hbm [shape: f32[1,512], index: 2, kind: input, shape index: {}]
  %s3 = inlined_call_operand.hbm [shape: bf16[512,128], index: 3, kind: input, shape index: {}]
  %s4 = inlined_call_operand.vmem [shape: f32[1,128], index: 4, kind: input, shape index: {}]
  %s5 = inlined_call_operand.hbm [shape: f32[16,128], index: 5, kind: output, shape index: {}]
  %s6 = sld [smem:[#allocation0]]
  $region46: #{tpu_custom_call.1} parent=0
    _
  %s8 = ssub.s32 1, %s6
  %s9 = scalar_select 0, %s8, %s6
  $region1: #{tpu_custom_call.1} parent=0
    #allocation3 [shape = 'u8[8192]{0}', space=vmem, size = 0x2000, scoped, tag = 'input window, operand 0, single buffered']
    #allocation4 [shape = 's32[1]{0}', space=sflag, size = 0x4, scoped, tag = 'scoped memory for tpu_custom_call.1']
    #allocation5 [shape = 's32[1]{0}', space=sflag, size = 0x4, scoped, tag = 'scoped memory for tpu_custom_call.1']
    #allocation6 [shape = 'u8[131072]{0}', space=vmem, size = 0x20000, scoped, tag = 'input window, operand 1, single buffered']
    #allocation7 [shape = 's32[1]{0}', space=sflag, size = 0x4, scoped, tag = 'scoped memory for tpu_custom_call.1']
    #allocation8 [shape = 'u8[2048]{0}', space=vmem, size = 0x800, scoped, tag = 'input window, operand 2, single buffered']
    #allocation9 [shape = 'u8[131072]{0}', space=vmem, size = 0x20000, scoped, tag = 'input window, operand 3, single buffered']
    #allocation10 [shape = 's32[1]{0}', space=sflag, size = 0x4, scoped, tag = 'scoped memory for tpu_custom_call.1']
    #allocation11 [shape = 'u8[8192]{0}', space=vmem, size = 0x2000, scoped, tag = 'output window, operand 0, single buffered']
    %10 = vsyncpa [#allocation4], 0
    %11 = vsyncpa [#allocation7], 0
    %12 = vsyncpa [#allocation10], 0
    %13 = vsyncpa [#allocation5], 0
    // Predicated region
    $region2: #{tpu_custom_call.1} parent=1 // pred_check
      _
    $region3: #{tpu_custom_call.1} parent=1 // pred_check_branch
      %15 = sbr.rel (0) target = $region5
    $region4: #{tpu_custom_call.1} parent=1 // pred_region
      %s17 = ssub.s32 256, 256
      %18 = vsyncadd [#allocation4], %s17
      %s19 = sshll.u32 [#allocation3], 4
      %s20 = int_to_ptr.vmem [resolvable:$true] %s19
      %25 = dma.hbm_to_vmem [thread:$0]  %s0, 256, %s20, [#allocation4], 128, 128, 8
    $region5: #{tpu_custom_call.1} parent=1 // pred_fallthru
      _
    // Predicated region
    $region6: #{tpu_custom_call.1} parent=1 // pred_check
      _
    $region7: #{tpu_custom_call.1} parent=1 // pred_check_branch
      %27 = sbr.rel (0) target = $region9
    $region8: #{tpu_custom_call.1} parent=1 // pred_region
      %s29 = ssub.s32 4096, 4096
      %30 = vsyncadd [#allocation7], %s29
      %s31 = sshll.u32 [#allocation6], 4
      %s32 = int_to_ptr.vmem [resolvable:$true] %s31
      %37 = dma.hbm_to_vmem [thread:$0]  %s1, 4096, %s32, [#allocation7], 256, 256, 16
    $region9: #{tpu_custom_call.1} parent=1 // pred_fallthru
      _
    // Predicated region
    $region10: #{tpu_custom_call.1} parent=1 // pred_check
      _
    $region11: #{tpu_custom_call.1} parent=1 // pred_check_branch
      %39 = sbr.rel (0) target = $region13
    $region12: #{tpu_custom_call.1} parent=1 // pred_region
      %s41 = ssub.s32 64, 64
      %42 = vsyncadd [#allocation7], %s41
      %s44 = sshll.u32 [#allocation8], 4
      %s45 = int_to_ptr.vmem [resolvable:$true] %s44
      %47 = dma.hbm_to_vmem [thread:$0]  %s2, 64, %s45, [#allocation7]
    $region13: #{tpu_custom_call.1} parent=1 // pred_fallthru
      _
    // Predicated region
    $region14: #{tpu_custom_call.1} parent=1 // pred_check
      _
    $region15: #{tpu_custom_call.1} parent=1 // pred_check_branch
      %49 = sbr.rel (0) target = $region17
    $region16: #{tpu_custom_call.1} parent=1 // pred_region
      %s51 = ssub.s32 4096, 4096
      %52 = vsyncadd [#allocation10], %s51
      %s53 = sshll.u32 [#allocation9], 4
      %s54 = int_to_ptr.vmem [resolvable:$true] %s53
      %59 = dma.hbm_to_vmem [thread:$0]  %s3, 4096, %s54, [#allocation10], 64, 64, 4
    $region17: #{tpu_custom_call.1} parent=1 // pred_fallthru
      _
    // Predicated region
    $region18: #{tpu_custom_call.1} parent=1 // pred_check
      _
    $region19: #{tpu_custom_call.1} parent=1 // pred_check_branch
      %61 = sbr.rel (0) target = $region21
    $region20: #{tpu_custom_call.1} parent=1 // pred_region
      _
    $region21: #{tpu_custom_call.1} parent=1 // pred_fallthru
      _
    // Predicated region
    $region22: #{tpu_custom_call.1} parent=1 // pred_check
      _
    $region23: #{tpu_custom_call.1} parent=1 // pred_check_branch
      %63 = sbr.rel (0) target = $region25
    $region24: #{tpu_custom_call.1} parent=1 // pred_region
      %64 = dma.done [#allocation4], 256
    $region25: #{tpu_custom_call.1} parent=1 // pred_fallthru
      _
    // Predicated region
    $region26: #{tpu_custom_call.1} parent=1 // pred_check
      _
    $region27: #{tpu_custom_call.1} parent=1 // pred_check_branch
      %66 = sbr.rel (0) target = $region29
    $region28: #{tpu_custom_call.1} parent=1 // pred_region
      %67 = dma.done [#allocation7], 4096
    $region29: #{tpu_custom_call.1} parent=1 // pred_fallthru
      _
    // Predicated region
    $region30: #{tpu_custom_call.1} parent=1 // pred_check
      _
    $region31: #{tpu_custom_call.1} parent=1 // pred_check_branch
      %69 = sbr.rel (0) target = $region33
    $region32: #{tpu_custom_call.1} parent=1 // pred_region
      %70 = dma.done [#allocation7], 64
    $region33: #{tpu_custom_call.1} parent=1 // pred_fallthru
      _
    // Predicated region
    $region34: #{tpu_custom_call.1} parent=1 // pred_check
      _
    $region35: #{tpu_custom_call.1} parent=1 // pred_check_branch
      %72 = sbr.rel (0) target = $region37
    $region36: #{tpu_custom_call.1} parent=1 // pred_region
      %73 = dma.done [#allocation10], 4096
    $region37: #{tpu_custom_call.1} parent=1 // pred_fallthru
      _
    %v75 = vld [vmem:[#allocation3] sm:$0xff]
    %v76 = vld [vmem:[#allocation3 + $0x8] sm:$0xff]
    %v77 = vpack.c.bf16 %v76, %v75
    %v78 = vld [vmem:[#allocation6] sm:$0xff]
    %v79 = vld [vmem:[#allocation6 + $0x8] sm:$0xff]
    %v80 = vld [vmem:[#allocation6 + $0x10] sm:$0xff]
    %v81 = vld [vmem:[#allocation6 + $0x18] sm:$0xff]
    %v82 = vld [vmem:[#allocation6 + $0x20] sm:$0xff]
    %v83 = vld [vmem:[#allocation6 + $0x28] sm:$0xff]
    %v84 = vld [vmem:[#allocation6 + $0x30] sm:$0xff]
    %v85 = vld [vmem:[#allocation6 + $0x38] sm:$0xff]
    %v86 = vld [vmem:[#allocation6 + $0x40] sm:$0xff]
    %v87 = vld [vmem:[#allocation6 + $0x48] sm:$0xff]
    %v88 = vld [vmem:[#allocation6 + $0x50] sm:$0xff]
    %v89 = vld [vmem:[#allocation6 + $0x58] sm:$0xff]
    %v90 = vld [vmem:[#allocation6 + $0x60] sm:$0xff]
    %v91 = vld [vmem:[#allocation6 + $0x68] sm:$0xff]
    %v92 = vld [vmem:[#allocation6 + $0x70] sm:$0xff]
    %v93 = vld [vmem:[#allocation6 + $0x78] sm:$0xff]
    %v94 = vld [vmem:[#allocation6 + $0x80] sm:$0xff]
    %v95 = vld [vmem:[#allocation6 + $0x88] sm:$0xff]
    %v96 = vld [vmem:[#allocation6 + $0x90] sm:$0xff]
    %v97 = vld [vmem:[#allocation6 + $0x98] sm:$0xff]
    %v98 = vld [vmem:[#allocation6 + $0xa0] sm:$0xff]
    %v99 = vld [vmem:[#allocation6 + $0xa8] sm:$0xff]
    %v100 = vld [vmem:[#allocation6 + $0xb0] sm:$0xff]
    %v101 = vld [vmem:[#allocation6 + $0xb8] sm:$0xff]
    %v102 = vld [vmem:[#allocation6 + $0xc0] sm:$0xff]
    %v103 = vld [vmem:[#allocation6 + $0xc8] sm:$0xff]
    %v104 = vld [vmem:[#allocation6 + $0xd0] sm:$0xff]
    %v105 = vld [vmem:[#allocation6 + $0xd8] sm:$0xff]
    %v106 = vld [vmem:[#allocation6 + $0xe0] sm:$0xff]
    %v107 = vld [vmem:[#allocation6 + $0xe8] sm:$0xff]
    %v108 = vld [vmem:[#allocation6 + $0xf0] sm:$0xff]
    %v109 = vld [vmem:[#allocation6 + $0xf8] sm:$0xff]
    %v110 = vld [vmem:[#allocation8] sm:$0xf]
    %v112 = vlaneseq
    %v113 = vshrl.u32 %v112, 7
    %v114 = vsub.s32 0, %v113
    %v115 = vrot.slane %v110, %v114
    %v116 = vlaneseq
    %v117 = vshrl.u32 %v116, 7
    %v118 = vsub.s32 1, %v117
    %v119 = vrot.slane %v110, %v118
    %v120 = vlaneseq
    %v121 = vshrl.u32 %v120, 7
    %v122 = vsub.s32 2, %v121
    %v123 = vrot.slane %v110, %v122
    %v124 = vlaneseq
    %v125 = vshrl.u32 %v124, 7
    %v126 = vsub.s32 3, %v125
    %v127 = vrot.slane %v110, %v126
    %v164 = vunpack.c.l.b16 %v78
    %v165 = vunpack.c.h.b16 %v78
    %v166 = vunpack.c.l.b16 %v79
    %v167 = vunpack.c.h.b16 %v79
    %v168 = vunpack.c.l.b16 %v80
    %v169 = vunpack.c.h.b16 %v80
    %v170 = vunpack.c.l.b16 %v81
    %v171 = vunpack.c.h.b16 %v81
    %v172 = vunpack.c.l.b16 %v82
    %v173 = vunpack.c.h.b16 %v82
    %v174 = vunpack.c.l.b16 %v83
    %v175 = vunpack.c.h.b16 %v83
    %v176 = vunpack.c.l.b16 %v84
    %v177 = vunpack.c.h.b16 %v84
    %v178 = vunpack.c.l.b16 %v85
    %v179 = vunpack.c.h.b16 %v85
    %v180 = vunpack.c.l.b16 %v86
    %v181 = vunpack.c.h.b16 %v86
    %v182 = vunpack.c.l.b16 %v87
    %v183 = vunpack.c.h.b16 %v87
    %v184 = vunpack.c.l.b16 %v88
    %v185 = vunpack.c.h.b16 %v88
    %v186 = vunpack.c.l.b16 %v89
    %v187 = vunpack.c.h.b16 %v89
    %v188 = vunpack.c.l.b16 %v90
    %v189 = vunpack.c.h.b16 %v90
    %v190 = vunpack.c.l.b16 %v91
    %v191 = vunpack.c.h.b16 %v91
    %v192 = vunpack.c.l.b16 %v92
    %v193 = vunpack.c.h.b16 %v92
    %v194 = vunpack.c.l.b16 %v93
    %v195 = vunpack.c.h.b16 %v93
    %v196 = vunpack.c.l.b16 %v94
    %v197 = vunpack.c.h.b16 %v94
    %v198 = vunpack.c.l.b16 %v95
    %v199 = vunpack.c.h.b16 %v95
    %v200 = vunpack.c.l.b16 %v96
    %v201 = vunpack.c.h.b16 %v96
    %v202 = vunpack.c.l.b16 %v97
    %v203 = vunpack.c.h.b16 %v97
    %v204 = vunpack.c.l.b16 %v98
    %v205 = vunpack.c.h.b16 %v98
    %v206 = vunpack.c.l.b16 %v99
    %v207 = vunpack.c.h.b16 %v99
    %v208 = vunpack.c.l.b16 %v100
    %v209 = vunpack.c.h.b16 %v100
    %v210 = vunpack.c.l.b16 %v101
    %v211 = vunpack.c.h.b16 %v101
    %v212 = vunpack.c.l.b16 %v102
    %v213 = vunpack.c.h.b16 %v102
    %v214 = vunpack.c.l.b16 %v103
    %v215 = vunpack.c.h.b16 %v103
    %v216 = vunpack.c.l.b16 %v104
    %v217 = vunpack.c.h.b16 %v104
    %v218 = vunpack.c.l.b16 %v105
    %v219 = vunpack.c.h.b16 %v105
    %v220 = vunpack.c.l.b16 %v106
    %v221 = vunpack.c.h.b16 %v106
    %v222 = vunpack.c.l.b16 %v107
    %v223 = vunpack.c.h.b16 %v107
    %v224 = vunpack.c.l.b16 %v108
    %v225 = vunpack.c.h.b16 %v108
    %v226 = vunpack.c.l.b16 %v109
    %v227 = vunpack.c.h.b16 %v109
    %v228 = vpack.c.b16 %v168, %v164
    %v229 = vpack.c.b16 %v169, %v165
    %v230 = vpack.c.b16 %v170, %v166
    %v231 = vpack.c.b16 %v171, %v167
    %v232 = vpack.c.b16 %v176, %v172
    %v233 = vpack.c.b16 %v177, %v173
    %v234 = vpack.c.b16 %v178, %v174
    %v235 = vpack.c.b16 %v179, %v175
    %v236 = vpack.c.b16 %v184, %v180
    %v237 = vpack.c.b16 %v185, %v181
    %v238 = vpack.c.b16 %v186, %v182
    %v239 = vpack.c.b16 %v187, %v183
    %v240 = vpack.c.b16 %v192, %v188
    %v241 = vpack.c.b16 %v193, %v189
    %v242 = vpack.c.b16 %v194, %v190
    %v243 = vpack.c.b16 %v195, %v191
    %v244 = vpack.c.b16 %v200, %v196
    %v245 = vpack.c.b16 %v201, %v197
    %v246 = vpack.c.b16 %v202, %v198
    %v247 = vpack.c.b16 %v203, %v199
    %v248 = vpack.c.b16 %v208, %v204
    %v249 = vpack.c.b16 %v209, %v205
    %v250 = vpack.c.b16 %v210, %v206
    %v251 = vpack.c.b16 %v211, %v207
    %v252 = vpack.c.b16 %v216, %v212
    %v253 = vpack.c.b16 %v217, %v213
    %v254 = vpack.c.b16 %v218, %v214
    %v255 = vpack.c.b16 %v219, %v215
    %v256 = vpack.c.b16 %v224, %v220
    %v257 = vpack.c.b16 %v225, %v221
    %v258 = vpack.c.b16 %v226, %v222
    %v259 = vpack.c.b16 %v227, %v223
    %292 = vmatprep.subr.bf16.mxu0 %v257
    %293 = vmatpush1.bf16.msra.mxu0 %v256
    %294 = vmatprep.subr.bf16.mxu0 %v253
    %295 = vmatpush1.bf16.msra.mxu0 %v252
    %296 = vmatprep.subr.bf16.mxu0 %v249
    %297 = vmatpush1.bf16.msra.mxu0 %v248
    %298 = vmatprep.subr.bf16.mxu0 %v245
    %299 = vmatpush1.bf16.msra.mxu0 %v244
    %300 = vmatprep.subr.bf16.mxu0 %v241
    %301 = vmatpush1.bf16.msra.mxu0 %v240
    %302 = vmatprep.subr.bf16.mxu0 %v237
    %303 = vmatpush1.bf16.msra.mxu0 %v236
    %304 = vmatprep.subr.bf16.mxu0 %v233
    %305 = vmatpush1.bf16.msra.mxu0 %v232
    %306 = vmatprep.subr.bf16.mxu0 %v229
    %307 = vmatpush1.bf16.msra.mxu0 %v228
    %308 = vmatprep.subr.bf16.mxu0 0
    %309 = vmatpush2.bf16.msra.mxu0 0
    %310 = vmatprep.subr.bf16.mxu0 0
    %311 = vmatpush2.bf16.msra.mxu0 0
    %312 = vmatprep.subr.bf16.mxu0 0
    %313 = vmatpush2.bf16.msra.mxu0 0
    %314 = vmatprep.subr.bf16.mxu0 0
    %315 = vmatpush2.bf16.msra.mxu0 0
    %316 = vmatprep.subr.bf16.mxu0 0
    %317 = vmatpush2.bf16.msra.mxu0 0
    %318 = vmatprep.subr.bf16.mxu0 0
    %319 = vmatpush2.bf16.msra.mxu0 0
    %320 = vmatprep.subr.bf16.mxu0 0
    %321 = vmatpush2.bf16.msra.mxu0 0
    %322 = vmatprep.subr.bf16.mxu0 0
    %323 = vmatpush2.bf16.msra.mxu0 0
    %324 = vmatprep.mubr.bf16.mxu0 0
    %325 = vmatmul.mubr.bf16.gmra.mxu0 %v77
    %v326 = vpop.f32.mrf.mxu0
    %v327 = vadd.f32 %v115, %v326
    %v328 = vpop.f32.mrf.mxu0
    %v329 = vadd.f32 %v119, %v328
    %v330 = vpop.f32.mrf.mxu0
    %v331 = vadd.f32 %v115, %v330
    %v332 = vpop.f32.mrf.mxu0
    %v333 = vadd.f32 %v119, %v332
    %334 = vdwg.mxu0
    %335 = vmatprep.subr.bf16.mxu0 %v259
    %336 = vmatpush1.bf16.msra.mxu0 %v258
    %337 = vmatprep.subr.bf16.mxu0 %v255
    %338 = vmatpush1.bf16.msra.mxu0 %v254
    %339 = vmatprep.subr.bf16.mxu0 %v251
    %340 = vmatpush1.bf16.msra.mxu0 %v250
    %341 = vmatprep.subr.bf16.mxu0 %v247
    %342 = vmatpush1.bf16.msra.mxu0 %v246
    %343 = vmatprep.subr.bf16.mxu0 %v243
    %344 = vmatpush1.bf16.msra.mxu0 %v242
    %345 = vmatprep.subr.bf16.mxu0 %v239
    %346 = vmatpush1.bf16.msra.mxu0 %v238
    %347 = vmatprep.subr.bf16.mxu0 %v235
    %348 = vmatpush1.bf16.msra.mxu0 %v234
    %349 = vmatprep.subr.bf16.mxu0 %v231
    %350 = vmatpush1.bf16.msra.mxu0 %v230
    %351 = vmatprep.subr.bf16.mxu0 0
    %352 = vmatpush2.bf16.msra.mxu0 0
    %353 = vmatprep.subr.bf16.mxu0 0
    %354 = vmatpush2.bf16.msra.mxu0 0
    %355 = vmatprep.subr.bf16.mxu0 0
    %356 = vmatpush2.bf16.msra.mxu0 0
    %357 = vmatprep.subr.bf16.mxu0 0
    %358 = vmatpush2.bf16.msra.mxu0 0
    %359 = vmatprep.subr.bf16.mxu0 0
    %360 = vmatpush2.bf16.msra.mxu0 0
    %361 = vmatprep.subr.bf16.mxu0 0
    %362 = vmatpush2.bf16.msra.mxu0 0
    %363 = vmatprep.subr.bf16.mxu0 0
    %364 = vmatpush2.bf16.msra.mxu0 0
    %365 = vmatprep.subr.bf16.mxu0 0
    %366 = vmatpush2.bf16.msra.mxu0 0
    %367 = vmatprep.mubr.bf16.mxu0 0
    %368 = vmatmul.mubr.bf16.gmra.mxu0 %v77
    %v369 = vpop.f32.mrf.mxu0
    %v370 = vadd.f32 %v123, %v369
    %v371 = vpop.f32.mrf.mxu0
    %v372 = vadd.f32 %v127, %v371
    %v373 = vpop.f32.mrf.mxu0
    %v374 = vadd.f32 %v123, %v373
    %v375 = vpop.f32.mrf.mxu0
    %v376 = vadd.f32 %v127, %v375
    %377 = vdwg.mxu0
    %v378 = vmax.f32 %v327, 0.0
    %v379 = vmax.f32 %v329, 0.0
    %v380 = vmax.f32 %v370, 0.0
    %v381 = vmax.f32 %v372, 0.0
    %v382 = vmax.f32 %v331, 0.0
    %v383 = vmax.f32 %v333, 0.0
    %v384 = vmax.f32 %v374, 0.0
    %v385 = vmax.f32 %v376, 0.0
    %v386 = vpack.c.bf16 %v382, %v378
    %v387 = vpack.c.bf16 %v383, %v379
    %v388 = vpack.c.bf16 %v384, %v380
    %v389 = vpack.c.bf16 %v385, %v381
    %v394 = vunpack.c.l.b16 %v386
    %v395 = vunpack.c.l.b16 %v387
    %v396 = vunpack.c.l.b16 %v388
    %v397 = vunpack.c.l.b16 %v389
    %v398 = vunpack.c.h.b16 %v386
    %v399 = vunpack.c.h.b16 %v387
    %v400 = vunpack.c.h.b16 %v388
    %v401 = vunpack.c.h.b16 %v389
    %v402 = vpack.c.b16 %v395, %v394
    %v403 = vpack.c.b16 %v397, %v396
    %v404 = vpack.c.b16 %v399, %v398
    %v405 = vpack.c.b16 %v401, %v400
    %410 = vst [vmem:[#allocation2] sm:$0xff] %v402
    %411 = vst [vmem:[#allocation2 + $0x8] sm:$0xff] %v403
    %412 = vst [vmem:[#allocation2 + $0x10] sm:$0xff] %v404
    %413 = vst [vmem:[#allocation2 + $0x18] sm:$0xff] %v405
    %v414 = vld [vmem:[#allocation2] sm:$0xff]
    %v415 = vld [vmem:[#allocation2 + $0x8] sm:$0xff]
    %v416 = vld [vmem:[#allocation2 + $0x10] sm:$0xff]
    %v417 = vld [vmem:[#allocation2 + $0x18] sm:$0xff]
    %v418 = vld [vmem:[#allocation9] sm:$0xf]
    %v419 = vld [vmem:[#allocation9 + $0x4] sm:$0xf]
    %v420 = vld [vmem:[#allocation9 + $0x8] sm:$0xf]
    %v421 = vld [vmem:[#allocation9 + $0xc] sm:$0xf]
    %v422 = vld [vmem:[#allocation9 + $0x10] sm:$0xf]
    %v423 = vld [vmem:[#allocation9 + $0x14] sm:$0xf]
    %v424 = vld [vmem:[#allocation9 + $0x18] sm:$0xf]
    %v425 = vld [vmem:[#allocation9 + $0x1c] sm:$0xf]
    %v426 = vld [vmem:[#allocation9 + $0x20] sm:$0xf]
    %v427 = vld [vmem:[#allocation9 + $0x24] sm:$0xf]
    %v428 = vld [vmem:[#allocation9 + $0x28] sm:$0xf]
    %v429 = vld [vmem:[#allocation9 + $0x2c] sm:$0xf]
    %v430 = vld [vmem:[#allocation9 + $0x30] sm:$0xf]
    %v431 = vld [vmem:[#allocation9 + $0x34] sm:$0xf]
    %v432 = vld [vmem:[#allocation9 + $0x38] sm:$0xf]
    %v433 = vld [vmem:[#allocation9 + $0x3c] sm:$0xf]
    %v434 = vld [vmem:[#allocation9 + $0x40] sm:$0xf]
    %v435 = vld [vmem:[#allocation9 + $0x44] sm:$0xf]
    %v436 = vld [vmem:[#allocation9 + $0x48] sm:$0xf]
    %v437 = vld [vmem:[#allocation9 + $0x4c] sm:$0xf]
    %v438 = vld [vmem:[#allocation9 + $0x50] sm:$0xf]
    %v439 = vld [vmem:[#allocation9 + $0x54] sm:$0xf]
    %v440 = vld [vmem:[#allocation9 + $0x58] sm:$0xf]
    %v441 = vld [vmem:[#allocation9 + $0x5c] sm:$0xf]
    %v442 = vld [vmem:[#allocation9 + $0x60] sm:$0xf]
    %v443 = vld [vmem:[#allocation9 + $0x64] sm:$0xf]
    %v444 = vld [vmem:[#allocation9 + $0x68] sm:$0xf]
    %v445 = vld [vmem:[#allocation9 + $0x6c] sm:$0xf]
    %v446 = vld [vmem:[#allocation9 + $0x70] sm:$0xf]
    %v447 = vld [vmem:[#allocation9 + $0x74] sm:$0xf]
    %v448 = vld [vmem:[#allocation9 + $0x78] sm:$0xf]
    %v449 = vld [vmem:[#allocation9 + $0x7c] sm:$0xf]
    %v450 = vld [vmem:[#allocation9 + $0x80] sm:$0xf]
    %v451 = vld [vmem:[#allocation9 + $0x84] sm:$0xf]
    %v452 = vld [vmem:[#allocation9 + $0x88] sm:$0xf]
    %v453 = vld [vmem:[#allocation9 + $0x8c] sm:$0xf]
    %v454 = vld [vmem:[#allocation9 + $0x90] sm:$0xf]
    %v455 = vld [vmem:[#allocation9 + $0x94] sm:$0xf]
    %v456 = vld [vmem:[#allocation9 + $0x98] sm:$0xf]
    %v457 = vld [vmem:[#allocation9 + $0x9c] sm:$0xf]
    %v458 = vld [vmem:[#allocation9 + $0xa0] sm:$0xf]
    %v459 = vld [vmem:[#allocation9 + $0xa4] sm:$0xf]
    %v460 = vld [vmem:[#allocation9 + $0xa8] sm:$0xf]
    %v461 = vld [vmem:[#allocation9 + $0xac] sm:$0xf]
    %v462 = vld [vmem:[#allocation9 + $0xb0] sm:$0xf]
    %v463 = vld [vmem:[#allocation9 + $0xb4] sm:$0xf]
    %v464 = vld [vmem:[#allocation9 + $0xb8] sm:$0xf]
    %v465 = vld [vmem:[#allocation9 + $0xbc] sm:$0xf]
    %v466 = vld [vmem:[#allocation9 + $0xc0] sm:$0xf]
    %v467 = vld [vmem:[#allocation9 + $0xc4] sm:$0xf]
    %v468 = vld [vmem:[#allocation9 + $0xc8] sm:$0xf]
    %v469 = vld [vmem:[#allocation9 + $0xcc] sm:$0xf]
    %v470 = vld [vmem:[#allocation9 + $0xd0] sm:$0xf]
    %v471 = vld [vmem:[#allocation9 + $0xd4] sm:$0xf]
    %v472 = vld [vmem:[#allocation9 + $0xd8] sm:$0xf]
    %v473 = vld [vmem:[#allocation9 + $0xdc] sm:$0xf]
    %v474 = vld [vmem:[#allocation9 + $0xe0] sm:$0xf]
    %v475 = vld [vmem:[#allocation9 + $0xe4] sm:$0xf]
    %v476 = vld [vmem:[#allocation9 + $0xe8] sm:$0xf]
    %v477 = vld [vmem:[#allocation9 + $0xec] sm:$0xf]
    %v478 = vld [vmem:[#allocation9 + $0xf0] sm:$0xf]
    %v479 = vld [vmem:[#allocation9 + $0xf4] sm:$0xf]
    %v480 = vld [vmem:[#allocation9 + $0xf8] sm:$0xf]
    %v481 = vld [vmem:[#allocation9 + $0xfc] sm:$0xf]
    %v482 = vld [vmem:[%s4] sm:$0x1]
    %v484 = vlaneseq
    %v485 = vshrl.u32 %v484, 7
    %v486 = vsub.s32 0, %v485
    %v487 = vrot.slane %v482, %v486
    %v493 = vunpack.c.l.b16 %v414
    %v494 = vunpack.c.h.b16 %v414
    %v495 = vunpack.c.l.b16 %v415
    %v496 = vunpack.c.h.b16 %v415
    %v497 = vunpack.c.l.b16 %v416
    %v498 = vunpack.c.h.b16 %v416
    %v499 = vunpack.c.l.b16 %v417
    %v500 = vunpack.c.h.b16 %v417
    %v501 = vpack.c.b16 %v497, %v493
    %v502 = vpack.c.b16 %v498, %v494
    %v503 = vpack.c.b16 %v499, %v495
    %v504 = vpack.c.b16 %v500, %v496
    %v573 = vunpack.c.l.b16 %v418
    %v574 = vunpack.c.l.b16 %v419
    %v575 = vunpack.c.l.b16 %v420
    %v576 = vunpack.c.l.b16 %v421
    %v577 = vunpack.c.l.b16 %v422
    %v578 = vunpack.c.l.b16 %v423
    %v579 = vunpack.c.l.b16 %v424
    %v580 = vunpack.c.l.b16 %v425
    %v581 = vunpack.c.l.b16 %v426
    %v582 = vunpack.c.l.b16 %v427
    %v583 = vunpack.c.l.b16 %v428
    %v584 = vunpack.c.l.b16 %v429
    %v585 = vunpack.c.l.b16 %v430
    %v586 = vunpack.c.l.b16 %v431
    %v587 = vunpack.c.l.b16 %v432
    %v588 = vunpack.c.l.b16 %v433
    %v589 = vunpack.c.l.b16 %v434
    %v590 = vunpack.c.l.b16 %v435
    %v591 = vunpack.c.l.b16 %v436
    %v592 = vunpack.c.l.b16 %v437
    %v593 = vunpack.c.l.b16 %v438
    %v594 = vunpack.c.l.b16 %v439
    %v595 = vunpack.c.l.b16 %v440
    %v596 = vunpack.c.l.b16 %v441
    %v597 = vunpack.c.l.b16 %v442
    %v598 = vunpack.c.l.b16 %v443
    %v599 = vunpack.c.l.b16 %v444
    %v600 = vunpack.c.l.b16 %v445
    %v601 = vunpack.c.l.b16 %v446
    %v602 = vunpack.c.l.b16 %v447
    %v603 = vunpack.c.l.b16 %v448
    %v604 = vunpack.c.l.b16 %v449
    %v605 = vunpack.c.l.b16 %v450
    %v606 = vunpack.c.l.b16 %v451
    %v607 = vunpack.c.l.b16 %v452
    %v608 = vunpack.c.l.b16 %v453
    %v609 = vunpack.c.l.b16 %v454
    %v610 = vunpack.c.l.b16 %v455
    %v611 = vunpack.c.l.b16 %v456
    %v612 = vunpack.c.l.b16 %v457
    %v613 = vunpack.c.l.b16 %v458
    %v614 = vunpack.c.l.b16 %v459
    %v615 = vunpack.c.l.b16 %v460
    %v616 = vunpack.c.l.b16 %v461
    %v617 = vunpack.c.l.b16 %v462
    %v618 = vunpack.c.l.b16 %v463
    %v619 = vunpack.c.l.b16 %v464
    %v620 = vunpack.c.l.b16 %v465
    %v621 = vunpack.c.l.b16 %v466
    %v622 = vunpack.c.l.b16 %v467
    %v623 = vunpack.c.l.b16 %v468
    %v624 = vunpack.c.l.b16 %v469
    %v625 = vunpack.c.l.b16 %v470
    %v626 = vunpack.c.l.b16 %v471
    %v627 = vunpack.c.l.b16 %v472
    %v628 = vunpack.c.l.b16 %v473
    %v629 = vunpack.c.l.b16 %v474
    %v630 = vunpack.c.l.b16 %v475
    %v631 = vunpack.c.l.b16 %v476
    %v632 = vunpack.c.l.b16 %v477
    %v633 = vunpack.c.l.b16 %v478
    %v634 = vunpack.c.l.b16 %v479
    %v635 = vunpack.c.l.b16 %v480
    %v636 = vunpack.c.l.b16 %v481
    %v637 = vpack.c.b16 %v574, %v573
    %v638 = vpack.c.b16 %v576, %v575
    %v639 = vpack.c.b16 %v578, %v577
    %v640 = vpack.c.b16 %v580, %v579
    %v641 = vpack.c.b16 %v582, %v581
    %v642 = vpack.c.b16 %v584, %v583
    %v643 = vpack.c.b16 %v586, %v585
    %v644 = vpack.c.b16 %v588, %v587
    %v645 = vpack.c.b16 %v590, %v589
    %v646 = vpack.c.b16 %v592, %v591
    %v647 = vpack.c.b16 %v594, %v593
    %v648 = vpack.c.b16 %v596, %v595
    %v649 = vpack.c.b16 %v598, %v597
    %v650 = vpack.c.b16 %v600, %v599
    %v651 = vpack.c.b16 %v602, %v601
    %v652 = vpack.c.b16 %v604, %v603
    %v653 = vpack.c.b16 %v606, %v605
    %v654 = vpack.c.b16 %v608, %v607
    %v655 = vpack.c.b16 %v610, %v609
    %v656 = vpack.c.b16 %v612, %v611
    %v657 = vpack.c.b16 %v614, %v613
    %v658 = vpack.c.b16 %v616, %v615
    %v659 = vpack.c.b16 %v618, %v617
    %v660 = vpack.c.b16 %v620, %v619
    %v661 = vpack.c.b16 %v622, %v621
    %v662 = vpack.c.b16 %v624, %v623
    %v663 = vpack.c.b16 %v626, %v625
    %v664 = vpack.c.b16 %v628, %v627
    %v665 = vpack.c.b16 %v630, %v629
    %v666 = vpack.c.b16 %v632, %v631
    %v667 = vpack.c.b16 %v634, %v633
    %v668 = vpack.c.b16 %v636, %v635
    %701 = vmatprep.subr.bf16.mxu0 0
    %702 = vmatpush1.bf16.msra.mxu0 %v644
    %703 = vmatprep.subr.bf16.mxu0 0
    %704 = vmatpush1.bf16.msra.mxu0 %v643
    %705 = vmatprep.subr.bf16.mxu0 0
    %706 = vmatpush1.bf16.msra.mxu0 %v642
    %707 = vmatprep.subr.bf16.mxu0 0
    %708 = vmatpush1.bf16.msra.mxu0 %v641
    %709 = vmatprep.subr.bf16.mxu0 0
    %710 = vmatpush1.bf16.msra.mxu0 %v640
    %711 = vmatprep.subr.bf16.mxu0 0
    %712 = vmatpush1.bf16.msra.mxu0 %v639
    %713 = vmatprep.subr.bf16.mxu0 0
    %714 = vmatpush1.bf16.msra.mxu0 %v638
    %715 = vmatprep.subr.bf16.mxu0 0
    %716 = vmatpush1.bf16.msra.mxu0 %v637
    %717 = vmatprep.subr.bf16.mxu0 0
    %718 = vmatpush2.bf16.msra.mxu0 %v652
    %719 = vmatprep.subr.bf16.mxu0 0
    %720 = vmatpush2.bf16.msra.mxu0 %v651
    %721 = vmatprep.subr.bf16.mxu0 0
    %722 = vmatpush2.bf16.msra.mxu0 %v650
    %723 = vmatprep.subr.bf16.mxu0 0
    %724 = vmatpush2.bf16.msra.mxu0 %v649
    %725 = vmatprep.subr.bf16.mxu0 0
    %726 = vmatpush2.bf16.msra.mxu0 %v648
    %727 = vmatprep.subr.bf16.mxu0 0
    %728 = vmatpush2.bf16.msra.mxu0 %v647
    %729 = vmatprep.subr.bf16.mxu0 0
    %730 = vmatpush2.bf16.msra.mxu0 %v646
    %731 = vmatprep.subr.bf16.mxu0 0
    %732 = vmatpush2.bf16.msra.mxu0 %v645
    %733 = vmatprep.mubr.bf16.mxu0 %v502
    %734 = vmatmul.mubr.bf16.gmra.mxu0 %v501
    %v735 = vpop.f32.mrf.mxu0
    %v736 = vadd.f32 %v487, %v735
    %v737 = vpop.f32.mrf.mxu0
    %v738 = vpop.f32.mrf.mxu0
    %v739 = vadd.f32 %v487, %v738
    %v740 = vpop.f32.mrf.mxu0
    %741 = vdwg.mxu0
    %742 = vmatprep.subr.bf16.mxu0 0
    %743 = vmatpush1.bf16.msra.mxu0 %v660
    %744 = vmatprep.subr.bf16.mxu0 0
    %745 = vmatpush1.bf16.msra.mxu0 %v659
    %746 = vmatprep.subr.bf16.mxu0 0
    %747 = vmatpush1.bf16.msra.mxu0 %v658
    %748 = vmatprep.subr.bf16.mxu0 0
    %749 = vmatpush1.bf16.msra.mxu0 %v657
    %750 = vmatprep.subr.bf16.mxu0 0
    %751 = vmatpush1.bf16.msra.mxu0 %v656
    %752 = vmatprep.subr.bf16.mxu0 0
    %753 = vmatpush1.bf16.msra.mxu0 %v655
    %754 = vmatprep.subr.bf16.mxu0 0
    %755 = vmatpush1.bf16.msra.mxu0 %v654
    %756 = vmatprep.subr.bf16.mxu0 0
    %757 = vmatpush1.bf16.msra.mxu0 %v653
    %758 = vmatprep.subr.bf16.mxu0 0
    %759 = vmatpush2.bf16.msra.mxu0 %v668
    %760 = vmatprep.subr.bf16.mxu0 0
    %761 = vmatpush2.bf16.msra.mxu0 %v667
    %762 = vmatprep.subr.bf16.mxu0 0
    %763 = vmatpush2.bf16.msra.mxu0 %v666
    %764 = vmatprep.subr.bf16.mxu0 0
    %765 = vmatpush2.bf16.msra.mxu0 %v665
    %766 = vmatprep.subr.bf16.mxu0 0
    %767 = vmatpush2.bf16.msra.mxu0 %v664
    %768 = vmatprep.subr.bf16.mxu0 0
    %769 = vmatpush2.bf16.msra.mxu0 %v663
    %770 = vmatprep.subr.bf16.mxu0 0
    %771 = vmatpush2.bf16.msra.mxu0 %v662
    %772 = vmatprep.subr.bf16.mxu0 0
    %773 = vmatpush2.bf16.msra.mxu0 %v661
    %774 = vmatprep.mubr.bf16.mxu0 %v504
    %775 = vmatmul.mubr.bf16.gmra.mxu0 %v503
    %v776 = vpop.f32.mrf.mxu0
    %v777 = vadd.f32 %v736, %v776
    %v778 = vpop.f32.mrf.mxu0
    %v779 = vpop.f32.mrf.mxu0
    %v780 = vadd.f32 %v739, %v779
    %v781 = vpop.f32.mrf.mxu0
    %782 = vdwg.mxu0
    %783 = vst [vmem:[#allocation11] sm:$0xff] %v777
    %784 = vst [vmem:[#allocation11 + $0x8] sm:$0xff] %v780
    // Predicated region
    $region38: #{tpu_custom_call.1} parent=1 // pred_check
      _
    $region39: #{tpu_custom_call.1} parent=1 // pred_check_branch
      %786 = sbr.rel (0) target = $region41
    $region40: #{tpu_custom_call.1} parent=1 // pred_region
      %s788 = ssub.s32 256, 256
      %789 = vsyncadd [#allocation5], %s788
      %s790 = sshll.u32 [#allocation11], 4
      %s791 = int_to_ptr.vmem [resolvable:$true] %s790
      %796 = dma.vmem_to_hbm [thread:$0]  %s791, 256, %s5, [#allocation5], 128, 128, 8
    $region41: #{tpu_custom_call.1} parent=1 // pred_fallthru
      _
    // Predicated region
    $region42: #{tpu_custom_call.1} parent=1 // pred_check
      _
    $region43: #{tpu_custom_call.1} parent=1 // pred_check_branch
      %798 = sbr.rel (0) target = $region45
    $region44: #{tpu_custom_call.1} parent=1 // pred_region
      %799 = dma.done [#allocation5], 256
    $region45: #{tpu_custom_call.1} parent=1 // pred_fallthru
      _
    %800 = vsyncpa [#allocation4], 1
    %801 = vsyncpa [#allocation7], 1
    %802 = vsyncpa [#allocation10], 1
    %803 = vsyncpa [#allocation5], 1

</llo_original>
